<compile_context>
chip_gen: v7x
topology: tpu7x:2x2x1
jax: 0.10.0
libtpu: 0.0.40
codegen_flags: <defaults>
</compile_context>

<pallas_src>
from functools import partial

import jax
import jax.numpy as jnp
from jax.experimental import pallas as pl
from jax.experimental.pallas import tpu as pltpu

# ----------------------------- config constants ------------------------------------
DEPTH_NEAR = 0.5
DEPTH_FAR = 10.0
NUM_PLANES = 4            # GBiNet always subdivides into 4 hypotheses per pixel
FEATURE_CHANNELS = 8      # stand-in feature width for the (external) FPN stage
LANES = 128
MAX_SUBLANES_PER_TILE = 512        # ~10 MiB/step incl. temporaries -> fits every generation
VMEM_LIMIT_BYTES = 64 << 20        # raise v5e's 16 MiB default; <= v7x physical 64 MiB

COST_DTYPE = jnp.bfloat16          # bandwidth-bound kernel: halve the 8 cost/next planes
HYP_DTYPE = jnp.bfloat16           # (depth / confidence / index stay full precision)


def _round_up(x, m):
    return ((x + m - 1) // m) * m


# ----------------------------- tiling planners --------------------------------------
def _plan_sublane_tile(s_total, batch, max_sublanes=MAX_SUBLANES_PER_TILE):
    """Lane-packed path: pick a sublane tile (multiple of 16) and a padded sublane
    count so every block is bounded and batch * n_tiles >= 2 whenever possible."""
    tile = min(max_sublanes, _round_up(s_total, 16))
    if batch < 2 and s_total >= 32:                       # keep both v7x TCs busy
        tile = min(tile, _round_up((s_total + 1) // 2, 16))
    tile = max(16, (tile // 16) * 16)
    s_padded = _round_up(s_total, tile)
    return tile, s_padded, s_padded // tile


def _plan_h_tile(H, W, batch, max_sublanes=MAX_SUBLANES_PER_TILE):
    """NCHW path (W % 128 == 0): largest divisor of H that is a multiple of 16 and
    fits the VMEM budget; whole-H only when small; None -> fall back to packed path."""
    lane_groups = W // LANES
    budget = max(16, (max_sublanes // max(lane_groups, 1)) // 16 * 16)
    cap = budget
    if batch < 2 and H >= 32:                             # >=2 grid blocks for megacore
        cap = min(cap, H // 2)
    best = None
    t = 16
    while t <= min(cap, H):
        if H % t == 0:
            best = t
        t += 16
    if best is not None:
        return best
    if H * lane_groups <= 2 * max_sublanes:               # small image: one full-H block
        return H
    return None


# ----------------------------- fused GBiNet head kernel ----------------------------
def gbinet_fused_kernel(w_ref, img_ref,
                        cost_ref, idx_ref, depth_ref, conf_ref, next_ref,
                        *, num_planes, center0, plane_step, depth_near, depth_far):
    """One (batch, row-tile) block.

    w_ref    : (D, C)          SMEM scalar prefetch — folded 1x1 projection weights
    img_ref  : (1, C, R, L)    VMEM reference-image tile
    cost_ref : (1, D, R, L)    regularized cost volume (bf16, written once)
    idx_ref  : (1, R, L)       int32 argmax plane index
    depth_ref: (1, 1, R, L)    gathered depth (f32)
    conf_ref : (1, 1, R, L)    max softmax probability (f32)
    next_ref : (1, D, R, L)    subdivided hypotheses (bf16)
    """
    D = num_planes
    C = img_ref.shape[1]
    chans = [img_ref[0, c] for c in range(C)]              # (R, L) f32 slabs

    # --- stand-in cost volume: D tiny VPU FMA chains (a 4x3 contraction needs no MXU)
    cost_planes = []
    for d in range(D):
        acc = w_ref[d, 0] * chans[0]
        for c in range(1, C):
            acc = acc + w_ref[d, c] * chans[c]
        cost_planes.append(acc)
        cost_ref[0, d] = acc.astype(cost_ref.dtype)        # module output, written once

    # --- argmax over planes (strict '>' == first-max, matches torch.argmax)
    best_v = cost_planes[0]
    best_i = jnp.zeros_like(best_v, dtype=jnp.int32)
    for d in range(1, D):
        upd = cost_planes[d] > best_v
        best_v = jnp.where(upd, cost_planes[d], best_v)
        best_i = jnp.where(upd, jnp.int32(d), best_i)
    # gathered uniform-hypothesis depth derived arithmetically from the index
    best_d = center0 + best_i.astype(jnp.float32) * plane_step

    # --- max(softmax) == 1 / sum(exp(c - max)); exp + approx reciprocal on the EUP
    denom = jnp.zeros_like(best_v)
    for d in range(D):
        denom = denom + jnp.exp(cost_planes[d] - best_v)
    conf = pl.reciprocal(denom, approx=True)

    # --- subdivide_hypotheses with near/far clamping.  Offsets are sorted and the
    #     spacing is a non-negative constant, so the per-pixel max of each shift is
    #     attained at the outermost plane (identical to the per-plane max in the ref).
    spacing = plane_step / D
    offsets = (-3.0, -1.0, 1.0, 3.0)
    nxt = [best_d + off * spacing for off in offsets]
    shift_up = jnp.maximum(depth_near - nxt[0], 0.0)
    nxt = [x + shift_up for x in nxt]
    shift_dn = jnp.maximum(nxt[-1] - depth_far, 0.0)
    nxt = [x - shift_dn for x in nxt]

    idx_ref[0] = best_i
    depth_ref[0, 0] = best_d
    conf_ref[0, 0] = conf
    for d in range(D):                                     # per-plane dense stores
        next_ref[0, d] = nxt[d].astype(next_ref.dtype)


def _fused_head_core(x, combined_w, row_tile, depth_near, depth_far, planes):
    """x: (B, C, R, L) f32 with L a multiple of 128 (or the full lane extent) and
    row_tile dividing R.  Returns (cost, idx, depth, conf, next) in (B, ..., R, L)."""
    B, C, R, L = x.shape
    n_tiles = R // row_tile
    plane_step = (depth_far - depth_near) / planes         # uniform-bin width
    center0 = depth_near + 0.5 * plane_step                # iteration==0 hypotheses

    kernel = partial(gbinet_fused_kernel,
                     num_planes=planes,
                     center0=float(center0), plane_step=float(plane_step),
                     depth_near=float(depth_near), depth_far=float(depth_far))

    grid_spec = pltpu.PrefetchScalarGridSpec(
        num_scalar_prefetch=1,                             # combined_w -> SMEM
        grid=(B, n_tiles),
        in_specs=[pl.BlockSpec((1, C, row_tile, L), lambda b, t, w: (b, 0, t, 0))],
        out_specs=(
            pl.BlockSpec((1, planes, row_tile, L), lambda b, t, w: (b, 0, t, 0)),
            pl.BlockSpec((1, row_tile, L), lambda b, t, w: (b, t, 0)),
            pl.BlockSpec((1, 1, row_tile, L), lambda b, t, w: (b, 0, t, 0)),
            pl.BlockSpec((1, 1, row_tile, L), lambda b, t, w: (b, 0, t, 0)),
            pl.BlockSpec((1, planes, row_tile, L), lambda b, t, w: (b, 0, t, 0)),
        ),
    )
    out_shape = (
        jax.ShapeDtypeStruct((B, planes, R, L), COST_DTYPE),   # cost volume
        jax.ShapeDtypeStruct((B, R, L), jnp.int32),            # pred index
        jax.ShapeDtypeStruct((B, 1, R, L), jnp.float32),       # depth
        jax.ShapeDtypeStruct((B, 1, R, L), jnp.float32),       # confidence
        jax.ShapeDtypeStruct((B, planes, R, L), HYP_DTYPE),    # next hypotheses
    )
    n_px = B * R * L
    cost_estimate = pl.CostEstimate(
        flops=64 * n_px,
        transcendentals=5 * n_px,
        bytes_accessed=n_px * (C * 4 + 2 * planes * 2 + 3 * 4))

    return pl.pallas_call(
        kernel,
        out_shape=out_shape,
        grid_spec=grid_spec,
        compiler_params=pltpu.CompilerParams(
            dimension_semantics=("parallel", "parallel"),
            vmem_limit_bytes=VMEM_LIMIT_BYTES),
        cost_estimate=cost_estimate,
    )(combined_w, x)


def gbinet_fused_head(ref_img, combined_w, depth_near, depth_far, planes=NUM_PLANES):
    """ref_img: (B, C, H, W) f32, combined_w: (planes, C) f32.
    Returns (cost_volume, pred_idx, depth, confidence, next_hypotheses) in NCHW."""
    B, C, H, W = ref_img.shape

    if W % LANES == 0:
        h_tile = _plan_h_tile(H, W, B)
        if h_tile is not None:
            # direct NCHW tiling: outputs already in final layout, zero wrapper copies
            return _fused_head_core(ref_img, combined_w, h_tile,
                                    depth_near, depth_far, planes)

    # lane-packed path: flatten HW into a dense (sublane, 128-lane) layout
    HW = H * W
    s_total = pl.cdiv(HW, LANES)
    s_tile, s_padded, _ = _plan_sublane_tile(s_total, B)
    pad = s_padded * LANES - HW
    x = ref_img.reshape(B, C, HW)
    if pad:                                                # lane/sublane pad; sliced off below
        x = jnp.pad(x, ((0, 0), (0, 0), (0, pad)))
    x = x.reshape(B, C, s_padded, LANES)

    cost, idx, depth, conf, nxt = _fused_head_core(
        x, combined_w, s_tile, depth_near, depth_far, planes)

    flat = s_padded * LANES
    cost = cost.reshape(B, planes, flat)[:, :, :HW].reshape(B, planes, H, W)
    nxt = nxt.reshape(B, planes, flat)[:, :, :HW].reshape(B, planes, H, W)
    idx = idx.reshape(B, flat)[:, :HW].reshape(B, H, W)
    depth = depth.reshape(B, 1, flat)[:, :, :HW].reshape(B, 1, H, W)
    conf = conf.reshape(B, 1, flat)[:, :, :HW].reshape(B, 1, H, W)
    return cost, idx, depth, conf, nxt


# ----------------------------- plain-JAX glue ---------------------------------------
def uniform_hypothesis(batch, H, W, near, far, planes=NUM_PLANES):
    # TODO(synk): external helper in the original repo; assumed bin-center formula
    # (bin_format=True, inv_depth=False): `planes` uniform bins between near and far.
    centers = near + (far - near) * (jnp.arange(planes, dtype=jnp.float32) + 0.5) / planes
    return jnp.broadcast_to(centers.reshape(1, planes, 1, 1), (batch, planes, H, W))


def _nearest_upsample_x2(x):
    # single broadcast+reshape instead of two chained jnp.repeat (one HBM round trip)
    B, P, H, W = x.shape
    return jnp.broadcast_to(x[:, :, :, None, :, None],
                            (B, P, H, 2, W, 2)).reshape(B, P, 2 * H, 2 * W)


def gbinet_forward(images, feat_w, proj_w, *, cfg_h, cfg_w, stage_ids, iteration=0):
    """Mirrors Network.forward for iteration==0 of a given stage."""
    B, V, _, H, W = images.shape

    # TODO(synk): FPN_small / homography_warp / PixelwiseNet / CostRegNet are external
    # modules; the stand-in is a single folded 1x1 projection of the reference view,
    # fused into the Pallas head kernel (no feature-map intermediate in HBM).
    ref_img = images[:, 0]                                   # (B, 3, H, W)
    combined_w = jnp.dot(proj_w, feat_w)                     # (planes, 3), folded at trace time

    hypotheses = uniform_hypothesis(B, H, W, DEPTH_NEAR, DEPTH_FAR)      # (B, 4, H, W)

    cost_volume, pred_idx, depth, conf, next_hyp = gbinet_fused_head(
        ref_img, combined_w, DEPTH_NEAR, DEPTH_FAR)

    # subdivide_hypotheses tail: nearest x2 upsample if the next stage is finer
    if iteration + 1 < len(stage_ids) and stage_ids[iteration + 1] > stage_ids[iteration]:
        next_hyp = _nearest_upsample_x2(next_hyp)

    # bilinear resize of depth/confidence to the configured full resolution
    if (H, W) != (cfg_h, cfg_w):
        depth = jax.image.resize(depth, (B, 1, cfg_h, cfg_w), method="bilinear")
        conf = jax.image.resize(conf, (B, 1, cfg_h, cfg_w), method="bilinear")

    return {
        "hypotheses": hypotheses,
        "next_hypotheses": next_hyp,
        "cost_volume": cost_volume,
        "pred_hypo_index": pred_idx,   # TODO(synk): torch used int64; int32 on TPU
        "final_depth": depth,
        "confidence": conf,
    }


# ----------------------------- reference (pure jnp) for checking --------------------
def cost_volume_reference(ref_img, combined_w):
    # f32 stand-in cost volume with the same channel association order as the kernel
    acc = combined_w[:, 0][None, :, None, None] * ref_img[:, None, 0]
    for c in range(1, ref_img.shape[1]):
        acc = acc + combined_w[:, c][None, :, None, None] * ref_img[:, None, c]
    return acc                                               # (B, planes, H, W) f32


def head_reference(cost_volume, hypotheses, idx=None):
    planes = hypotheses.shape[1]
    if idx is None:
        idx = jnp.argmax(cost_volume, axis=1).astype(jnp.int32)
    depth = jnp.take_along_axis(hypotheses, idx[:, None], axis=1)
    conf = jnp.max(jax.nn.softmax(cost_volume, axis=1), axis=1, keepdims=True)
    spacing = jnp.abs(hypotheses[:, 1] - hypotheses[:, 0]) / planes
    offs = jnp.array([-3.0, -1.0, 1.0, 3.0], jnp.float32).reshape(1, 4, 1, 1)
    nxt = depth + offs * spacing[:, None]
    nxt = nxt + jnp.where(nxt < DEPTH_NEAR, DEPTH_NEAR - nxt, 0.0).max(axis=1, keepdims=True)
    nxt = nxt - jnp.where(nxt > DEPTH_FAR, nxt - DEPTH_FAR, 0.0).max(axis=1, keepdims=True)
    return idx, depth, conf, nxt


def _run_case(key, B, V, H, W, stage_ids):
    k_img, k_fw, k_pw = jax.random.split(key, 3)
    images = jax.random.uniform(k_img, (B, V, 3, H, W), dtype=jnp.float32)
    feat_w = 0.1 * jax.random.normal(k_fw, (FEATURE_CHANNELS, 3), dtype=jnp.float32)
    proj_w = 0.5 * jax.random.normal(k_pw, (NUM_PLANES, FEATURE_CHANNELS), dtype=jnp.float32)

    out = gbinet_forward(images, feat_w, proj_w,
                         cfg_h=H, cfg_w=W, stage_ids=stage_ids, iteration=0)
    out = jax.block_until_ready(out)

    # pure-jnp f32 reference of the module's own head math
    combined_w = jnp.dot(proj_w, feat_w)
    cost_f32 = cost_volume_reference(images[:, 0], combined_w)

    # cost volume stored as bf16 -> relaxed tolerance
    assert jnp.allclose(out["cost_volume"].astype(jnp.float32), cost_f32,
                        rtol=2e-2, atol=1e-2)

    # argmax check tolerant to f32 ulp-level near-ties between kernel/XLA rounding
    r_idx_free = jnp.argmax(cost_f32, axis=1).astype(jnp.int32)
    sorted_cost = jnp.sort(cost_f32, axis=1)
    top_gap = sorted_cost[:, -1] - sorted_cost[:, -2]
    assert bool(jnp.all((out["pred_hypo_index"] == r_idx_free) | (top_gap < 1e-5)))

    # gather / softmax-max / subdivision reference evaluated at the kernel's index
    _, r_depth, r_conf, r_next = head_reference(cost_f32, out["hypotheses"],
                                                idx=out["pred_hypo_index"])
    if len(stage_ids) > 1 and stage_ids[1] > stage_ids[0]:
        r_next = jnp.repeat(jnp.repeat(r_next, 2, axis=2), 2, axis=3)
    r_depth, r_conf, r_next = jax.block_until_ready((r_depth, r_conf, r_next))

    assert jnp.allclose(out["final_depth"], r_depth, rtol=1e-5, atol=1e-5)
    # confidence uses pl.reciprocal(approx=True) -> relaxed tolerance
    assert jnp.allclose(out["confidence"], r_conf, rtol=1e-2, atol=1e-3)
    # next hypotheses stored as bf16 -> relaxed tolerance
    assert jnp.allclose(out["next_hypotheses"].astype(jnp.float32), r_next,
                        rtol=1e-2, atol=2e-2)


if __name__ == "__main__":
    key = jax.random.PRNGKey(0)
    k1, k2 = jax.random.split(key)
    # lane-packed path (W % 128 != 0), coarse->coarse stage (no upsample)
    _run_case(k1, B=2, V=3, H=16, W=16, stage_ids=(0, 0))
    # direct NCHW path (W % 128 == 0), next stage finer -> x2 nearest upsample
    _run_case(k2, B=1, V=2, H=32, W=128, stage_ids=(0, 1))
    print("KERNEL_OK")
</pallas_src>

<mosaic_0001>
module attributes {stable_mosaic.version = 11 : i64} {
  func.func @gbinet_fused_kernel(%arg0: i32, %arg1: i32, %arg2: memref<4x3xf32, #tpu.memory_space<smem>>, %arg3: memref<1x3x16x128xf32, #tpu.memory_space<vmem>>, %arg4: memref<1x4x16x128xbf16, #tpu.memory_space<vmem>>, %arg5: memref<1x16x128xi32, #tpu.memory_space<vmem>>, %arg6: memref<1x1x16x128xf32, #tpu.memory_space<vmem>>, %arg7: memref<1x1x16x128xf32, #tpu.memory_space<vmem>>, %arg8: memref<1x4x16x128xbf16, #tpu.memory_space<vmem>>) attributes {dimension_semantics = [#tpu.dimension_semantics<parallel>, #tpu.dimension_semantics<parallel>], iteration_bounds = array<i64: 2, 1>, scalar_prefetch = 1 : i64, scratch_operands = 0 : i64, tpu.core_type = #tpu.core_type<tc>, window_params = [{transform_indices = @transform_0, window_bounds = array<i64: 1, 3, 16, 128>}, {transform_indices = @transform_1, window_bounds = array<i64: 1, 4, 16, 128>}, {transform_indices = @transform_2, window_bounds = array<i64: 1, 16, 128>}, {transform_indices = @transform_3, window_bounds = array<i64: 1, 1, 16, 128>}, {transform_indices = @transform_4, window_bounds = array<i64: 1, 1, 16, 128>}, {transform_indices = @transform_5, window_bounds = array<i64: 1, 4, 16, 128>}]} {
    %c0 = arith.constant 0 : index
    %c0_0 = arith.constant 0 : index
    %c0_1 = arith.constant 0 : index
    %c0_2 = arith.constant 0 : index
    %0 = vector.load %arg3[%c0, %c0_0, %c0_1, %c0_2] : memref<1x3x16x128xf32, #tpu.memory_space<vmem>>, vector<1x1x16x128xf32>
    %1 = vector.shape_cast %0 : vector<1x1x16x128xf32> to vector<16x128xf32>
    %c0_3 = arith.constant 0 : index
    %c1 = arith.constant 1 : index
    %c0_4 = arith.constant 0 : index
    %c0_5 = arith.constant 0 : index
    %2 = vector.load %arg3[%c0_3, %c1, %c0_4, %c0_5] : memref<1x3x16x128xf32, #tpu.memory_space<vmem>>, vector<1x1x16x128xf32>
    %3 = vector.shape_cast %2 : vector<1x1x16x128xf32> to vector<16x128xf32>
    %c0_6 = arith.constant 0 : index
    %c2 = arith.constant 2 : index
    %c0_7 = arith.constant 0 : index
    %c0_8 = arith.constant 0 : index
    %4 = vector.load %arg3[%c0_6, %c2, %c0_7, %c0_8] : memref<1x3x16x128xf32, #tpu.memory_space<vmem>>, vector<1x1x16x128xf32>
    %5 = vector.shape_cast %4 : vector<1x1x16x128xf32> to vector<16x128xf32>
    %c0_9 = arith.constant 0 : index
    %c0_10 = arith.constant 0 : index
    %6 = memref.load %arg2[%c0_9, %c0_10] : memref<4x3xf32, #tpu.memory_space<smem>>
    %7 = vector.broadcast %6 : f32 to vector<16x128xf32>
    %8 = arith.mulf %7, %1 : vector<16x128xf32>
    %c0_11 = arith.constant 0 : index
    %c1_12 = arith.constant 1 : index
    %9 = memref.load %arg2[%c0_11, %c1_12] : memref<4x3xf32, #tpu.memory_space<smem>>
    %10 = vector.broadcast %9 : f32 to vector<16x128xf32>
    %11 = arith.mulf %10, %3 : vector<16x128xf32>
    %12 = arith.addf %8, %11 : vector<16x128xf32>
    %c0_13 = arith.constant 0 : index
    %c2_14 = arith.constant 2 : index
    %13 = memref.load %arg2[%c0_13, %c2_14] : memref<4x3xf32, #tpu.memory_space<smem>>
    %14 = vector.broadcast %13 : f32 to vector<16x128xf32>
    %15 = arith.mulf %14, %5 : vector<16x128xf32>
    %16 = arith.addf %12, %15 : vector<16x128xf32>
    %17 = arith.truncf %16 : vector<16x128xf32> to vector<16x128xbf16>
    %c0_15 = arith.constant 0 : index
    %c0_16 = arith.constant 0 : index
    %c0_17 = arith.constant 0 : index
    %c0_18 = arith.constant 0 : index
    %18 = vector.load %arg4[%c0_15, %c0_16, %c0_17, %c0_18] : memref<1x4x16x128xbf16, #tpu.memory_space<vmem>>, vector<1x1x16x128xbf16>
    %19 = vector.shape_cast %18 : vector<1x1x16x128xbf16> to vector<16x128xbf16>
    %20 = vector.shape_cast %17 : vector<16x128xbf16> to vector<1x1x16x128xbf16>
    tpu.vector_store %arg4[%c0_15, %c0_16, %c0_17, %c0_18], %20 {strides = array<i32>} : memref<1x4x16x128xbf16, #tpu.memory_space<vmem>>, vector<1x1x16x128xbf16>,
    %c1_19 = arith.constant 1 : index
    %c0_20 = arith.constant 0 : index
    %21 = memref.load %arg2[%c1_19, %c0_20] : memref<4x3xf32, #tpu.memory_space<smem>>
    %22 = vector.broadcast %21 : f32 to vector<16x128xf32>
    %23 = arith.mulf %22, %1 : vector<16x128xf32>
    %c1_21 = arith.constant 1 : index
    %c1_22 = arith.constant 1 : index
    %24 = memref.load %arg2[%c1_21, %c1_22] : memref<4x3xf32, #tpu.memory_space<smem>>
    %25 = vector.broadcast %24 : f32 to vector<16x128xf32>
    %26 = arith.mulf %25, %3 : vector<16x128xf32>
    %27 = arith.addf %23, %26 : vector<16x128xf32>
    %c1_23 = arith.constant 1 : index
    %c2_24 = arith.constant 2 : index
    %28 = memref.load %arg2[%c1_23, %c2_24] : memref<4x3xf32, #tpu.memory_space<smem>>
    %29 = vector.broadcast %28 : f32 to vector<16x128xf32>
    %30 = arith.mulf %29, %5 : vector<16x128xf32>
    %31 = arith.addf %27, %30 : vector<16x128xf32>
    %32 = arith.truncf %31 : vector<16x128xf32> to vector<16x128xbf16>
    %c0_25 = arith.constant 0 : index
    %c1_26 = arith.constant 1 : index
    %c0_27 = arith.constant 0 : index
    %c0_28 = arith.constant 0 : index
    %33 = vector.load %arg4[%c0_25, %c1_26, %c0_27, %c0_28] : memref<1x4x16x128xbf16, #tpu.memory_space<vmem>>, vector<1x1x16x128xbf16>
    %34 = vector.shape_cast %33 : vector<1x1x16x128xbf16> to vector<16x128xbf16>
    %35 = vector.shape_cast %32 : vector<16x128xbf16> to vector<1x1x16x128xbf16>
    tpu.vector_store %arg4[%c0_25, %c1_26, %c0_27, %c0_28], %35 {strides = array<i32>} : memref<1x4x16x128xbf16, #tpu.memory_space<vmem>>, vector<1x1x16x128xbf16>,
    %c2_29 = arith.constant 2 : index
    %c0_30 = arith.constant 0 : index
    %36 = memref.load %arg2[%c2_29, %c0_30] : memref<4x3xf32, #tpu.memory_space<smem>>
    %37 = vector.broadcast %36 : f32 to vector<16x128xf32>
    %38 = arith.mulf %37, %1 : vector<16x128xf32>
    %c2_31 = arith.constant 2 : index
    %c1_32 = arith.constant 1 : index
    %39 = memref.load %arg2[%c2_31, %c1_32] : memref<4x3xf32, #tpu.memory_space<smem>>
    %40 = vector.broadcast %39 : f32 to vector<16x128xf32>
    %41 = arith.mulf %40, %3 : vector<16x128xf32>
    %42 = arith.addf %38, %41 : vector<16x128xf32>
    %c2_33 = arith.constant 2 : index
    %c2_34 = arith.constant 2 : index
    %43 = memref.load %arg2[%c2_33, %c2_34] : memref<4x3xf32, #tpu.memory_space<smem>>
    %44 = vector.broadcast %43 : f32 to vector<16x128xf32>
    %45 = arith.mulf %44, %5 : vector<16x128xf32>
    %46 = arith.addf %42, %45 : vector<16x128xf32>
    %47 = arith.truncf %46 : vector<16x128xf32> to vector<16x128xbf16>
    %c0_35 = arith.constant 0 : index
    %c2_36 = arith.constant 2 : index
    %c0_37 = arith.constant 0 : index
    %c0_38 = arith.constant 0 : index
    %48 = vector.load %arg4[%c0_35, %c2_36, %c0_37, %c0_38] : memref<1x4x16x128xbf16, #tpu.memory_space<vmem>>, vector<1x1x16x128xbf16>
    %49 = vector.shape_cast %48 : vector<1x1x16x128xbf16> to vector<16x128xbf16>
    %50 = vector.shape_cast %47 : vector<16x128xbf16> to vector<1x1x16x128xbf16>
    tpu.vector_store %arg4[%c0_35, %c2_36, %c0_37, %c0_38], %50 {strides = array<i32>} : memref<1x4x16x128xbf16, #tpu.memory_space<vmem>>, vector<1x1x16x128xbf16>,
    %c3 = arith.constant 3 : index
    %c0_39 = arith.constant 0 : index
    %51 = memref.load %arg2[%c3, %c0_39] : memref<4x3xf32, #tpu.memory_space<smem>>
    %52 = vector.broadcast %51 : f32 to vector<16x128xf32>
    %53 = arith.mulf %52, %1 : vector<16x128xf32>
    %c3_40 = arith.constant 3 : index
    %c1_41 = arith.constant 1 : index
    %54 = memref.load %arg2[%c3_40, %c1_41] : memref<4x3xf32, #tpu.memory_space<smem>>
    %55 = vector.broadcast %54 : f32 to vector<16x128xf32>
    %56 = arith.mulf %55, %3 : vector<16x128xf32>
    %57 = arith.addf %53, %56 : vector<16x128xf32>
    %c3_42 = arith.constant 3 : index
    %c2_43 = arith.constant 2 : index
    %58 = memref.load %arg2[%c3_42, %c2_43] : memref<4x3xf32, #tpu.memory_space<smem>>
    %59 = vector.broadcast %58 : f32 to vector<16x128xf32>
    %60 = arith.mulf %59, %5 : vector<16x128xf32>
    %61 = arith.addf %57, %60 : vector<16x128xf32>
    %62 = arith.truncf %61 : vector<16x128xf32> to vector<16x128xbf16>
    %c0_44 = arith.constant 0 : index
    %c3_45 = arith.constant 3 : index
    %c0_46 = arith.constant 0 : index
    %c0_47 = arith.constant 0 : index
    %63 = vector.load %arg4[%c0_44, %c3_45, %c0_46, %c0_47] : memref<1x4x16x128xbf16, #tpu.memory_space<vmem>>, vector<1x1x16x128xbf16>
    %64 = vector.shape_cast %63 : vector<1x1x16x128xbf16> to vector<16x128xbf16>
    %65 = vector.shape_cast %62 : vector<16x128xbf16> to vector<1x1x16x128xbf16>
    tpu.vector_store %arg4[%c0_44, %c3_45, %c0_46, %c0_47], %65 {strides = array<i32>} : memref<1x4x16x128xbf16, #tpu.memory_space<vmem>>, vector<1x1x16x128xbf16>,
    %c0_i32 = arith.constant 0 : i32
    %66 = vector.broadcast %c0_i32 : i32 to vector<16x128xi32>
    %67 = arith.cmpf ogt, %31, %16 : vector<16x128xf32>
    %68 = arith.select %67, %31, %16 : vector<16x128xi1>, vector<16x128xf32>
    %c1_i32 = arith.constant 1 : i32
    %69 = vector.broadcast %c1_i32 : i32 to vector<16x128xi32>
    %70 = arith.select %67, %69, %66 : vector<16x128xi1>, vector<16x128xi32>
    %71 = arith.cmpf ogt, %46, %68 : vector<16x128xf32>
    %72 = arith.select %71, %46, %68 : vector<16x128xi1>, vector<16x128xf32>
    %c2_i32 = arith.constant 2 : i32
    %73 = vector.broadcast %c2_i32 : i32 to vector<16x128xi32>
    %74 = arith.select %71, %73, %70 : vector<16x128xi1>, vector<16x128xi32>
    %75 = arith.cmpf ogt, %61, %72 : vector<16x128xf32>
    %76 = arith.select %75, %61, %72 : vector<16x128xi1>, vector<16x128xf32>
    %c3_i32 = arith.constant 3 : i32
    %77 = vector.broadcast %c3_i32 : i32 to vector<16x128xi32>
    %78 = arith.select %75, %77, %74 : vector<16x128xi1>, vector<16x128xi32>
    %79 = arith.sitofp %78 : vector<16x128xi32> to vector<16x128xf32>
    %cst = arith.constant 2.375000e+00 : f32
    %80 = vector.broadcast %cst : f32 to vector<16x128xf32>
    %81 = arith.mulf %79, %80 : vector<16x128xf32>
    %cst_48 = arith.constant 1.687500e+00 : f32
    %82 = vector.broadcast %cst_48 : f32 to vector<16x128xf32>
    %83 = arith.addf %82, %81 : vector<16x128xf32>
    %cst_49 = arith.constant 0.000000e+00 : f32
    %84 = vector.broadcast %cst_49 : f32 to vector<16x128xf32>
    %85 = arith.subf %16, %76 : vector<16x128xf32>
    %86 = math.exp %85 : vector<16x128xf32>
    %87 = arith.addf %84, %86 : vector<16x128xf32>
    %88 = arith.subf %31, %76 : vector<16x128xf32>
    %89 = math.exp %88 : vector<16x128xf32>
    %90 = arith.addf %87, %89 : vector<16x128xf32>
    %91 = arith.subf %46, %76 : vector<16x128xf32>
    %92 = math.exp %91 : vector<16x128xf32>
    %93 = arith.addf %90, %92 : vector<16x128xf32>
    %94 = arith.subf %61, %76 : vector<16x128xf32>
    %95 = math.exp %94 : vector<16x128xf32>
    %96 = arith.addf %93, %95 : vector<16x128xf32>
    %97 = tpu.reciprocal %96 {approx = true} : vector<16x128xf32> -> vector<16x128xf32>
    %cst_50 = arith.constant -1.781250e+00 : f32
    %98 = vector.broadcast %cst_50 : f32 to vector<16x128xf32>
    %99 = arith.addf %83, %98 : vector<16x128xf32>
    %cst_51 = arith.constant -5.937500e-01 : f32
    %100 = vector.broadcast %cst_51 : f32 to vector<16x128xf32>
    %101 = arith.addf %83, %100 : vector<16x128xf32>
    %cst_52 = arith.constant 5.937500e-01 : f32
    %102 = vector.broadcast %cst_52 : f32 to vector<16x128xf32>
    %103 = arith.addf %83, %102 : vector<16x128xf32>
    %cst_53 = arith.constant 1.781250e+00 : f32
    %104 = vector.broadcast %cst_53 : f32 to vector<16x128xf32>
    %105 = arith.addf %83, %104 : vector<16x128xf32>
    %cst_54 = arith.constant 5.000000e-01 : f32
    %106 = vector.broadcast %cst_54 : f32 to vector<16x128xf32>
    %107 = arith.subf %106, %99 : vector<16x128xf32>
    %cst_55 = arith.constant 0.000000e+00 : f32
    %108 = vector.broadcast %cst_55 : f32 to vector<16x128xf32>
    %109 = arith.maximumf %107, %108 : vector<16x128xf32>
    %110 = arith.addf %99, %109 : vector<16x128xf32>
    %111 = arith.addf %101, %109 : vector<16x128xf32>
    %112 = arith.addf %103, %109 : vector<16x128xf32>
    %113 = arith.addf %105, %109 : vector<16x128xf32>
    %cst_56 = arith.constant 1.000000e+01 : f32
    %114 = vector.broadcast %cst_56 : f32 to vector<16x128xf32>
    %115 = arith.subf %113, %114 : vector<16x128xf32>
    %cst_57 = arith.constant 0.000000e+00 : f32
    %116 = vector.broadcast %cst_57 : f32 to vector<16x128xf32>
    %117 = arith.maximumf %115, %116 : vector<16x128xf32>
    %118 = arith.subf %110, %117 : vector<16x128xf32>
    %119 = arith.subf %111, %117 : vector<16x128xf32>
    %120 = arith.subf %112, %117 : vector<16x128xf32>
    %121 = arith.subf %113, %117 : vector<16x128xf32>
    %c0_58 = arith.constant 0 : index
    %c0_59 = arith.constant 0 : index
    %c0_60 = arith.constant 0 : index
    %122 = vector.load %arg5[%c0_58, %c0_59, %c0_60] : memref<1x16x128xi32, #tpu.memory_space<vmem>>, vector<1x16x128xi32>
    %123 = vector.shape_cast %122 : vector<1x16x128xi32> to vector<16x128xi32>
    %124 = vector.shape_cast %78 : vector<16x128xi32> to vector<1x16x128xi32>
    tpu.vector_store %arg5[%c0_58, %c0_59, %c0_60], %124 {strides = array<i32>} : memref<1x16x128xi32, #tpu.memory_space<vmem>>, vector<1x16x128xi32>,
    %c0_61 = arith.constant 0 : index
    %c0_62 = arith.constant 0 : index
    %c0_63 = arith.constant 0 : index
    %c0_64 = arith.constant 0 : index
    %125 = vector.load %arg6[%c0_61, %c0_62, %c0_63, %c0_64] : memref<1x1x16x128xf32, #tpu.memory_space<vmem>>, vector<1x1x16x128xf32>
    %126 = vector.shape_cast %125 : vector<1x1x16x128xf32> to vector<16x128xf32>
    %127 = vector.shape_cast %83 : vector<16x128xf32> to vector<1x1x16x128xf32>
    tpu.vector_store %arg6[%c0_61, %c0_62, %c0_63, %c0_64], %127 {strides = array<i32>} : memref<1x1x16x128xf32, #tpu.memory_space<vmem>>, vector<1x1x16x128xf32>,
    %c0_65 = arith.constant 0 : index
    %c0_66 = arith.constant 0 : index
    %c0_67 = arith.constant 0 : index
    %c0_68 = arith.constant 0 : index
    %128 = vector.load %arg7[%c0_65, %c0_66, %c0_67, %c0_68] : memref<1x1x16x128xf32, #tpu.memory_space<vmem>>, vector<1x1x16x128xf32>
    %129 = vector.shape_cast %128 : vector<1x1x16x128xf32> to vector<16x128xf32>
    %130 = vector.shape_cast %97 : vector<16x128xf32> to vector<1x1x16x128xf32>
    tpu.vector_store %arg7[%c0_65, %c0_66, %c0_67, %c0_68], %130 {strides = array<i32>} : memref<1x1x16x128xf32, #tpu.memory_space<vmem>>, vector<1x1x16x128xf32>,
    %131 = arith.truncf %118 : vector<16x128xf32> to vector<16x128xbf16>
    %c0_69 = arith.constant 0 : index
    %c0_70 = arith.constant 0 : index
    %c0_71 = arith.constant 0 : index
    %c0_72 = arith.constant 0 : index
    %132 = vector.load %arg8[%c0_69, %c0_70, %c0_71, %c0_72] : memref<1x4x16x128xbf16, #tpu.memory_space<vmem>>, vector<1x1x16x128xbf16>
    %133 = vector.shape_cast %132 : vector<1x1x16x128xbf16> to vector<16x128xbf16>
    %134 = vector.shape_cast %131 : vector<16x128xbf16> to vector<1x1x16x128xbf16>
    tpu.vector_store %arg8[%c0_69, %c0_70, %c0_71, %c0_72], %134 {strides = array<i32>} : memref<1x4x16x128xbf16, #tpu.memory_space<vmem>>, vector<1x1x16x128xbf16>,
    %135 = arith.truncf %119 : vector<16x128xf32> to vector<16x128xbf16>
    %c0_73 = arith.constant 0 : index
    %c1_74 = arith.constant 1 : index
    %c0_75 = arith.constant 0 : index
    %c0_76 = arith.constant 0 : index
    %136 = vector.load %arg8[%c0_73, %c1_74, %c0_75, %c0_76] : memref<1x4x16x128xbf16, #tpu.memory_space<vmem>>, vector<1x1x16x128xbf16>
    %137 = vector.shape_cast %136 : vector<1x1x16x128xbf16> to vector<16x128xbf16>
    %138 = vector.shape_cast %135 : vector<16x128xbf16> to vector<1x1x16x128xbf16>
    tpu.vector_store %arg8[%c0_73, %c1_74, %c0_75, %c0_76], %138 {strides = array<i32>} : memref<1x4x16x128xbf16, #tpu.memory_space<vmem>>, vector<1x1x16x128xbf16>,
    %139 = arith.truncf %120 : vector<16x128xf32> to vector<16x128xbf16>
    %c0_77 = arith.constant 0 : index
    %c2_78 = arith.constant 2 : index
    %c0_79 = arith.constant 0 : index
    %c0_80 = arith.constant 0 : index
    %140 = vector.load %arg8[%c0_77, %c2_78, %c0_79, %c0_80] : memref<1x4x16x128xbf16, #tpu.memory_space<vmem>>, vector<1x1x16x128xbf16>
    %141 = vector.shape_cast %140 : vector<1x1x16x128xbf16> to vector<16x128xbf16>
    %142 = vector.shape_cast %139 : vector<16x128xbf16> to vector<1x1x16x128xbf16>
    tpu.vector_store %arg8[%c0_77, %c2_78, %c0_79, %c0_80], %142 {strides = array<i32>} : memref<1x4x16x128xbf16, #tpu.memory_space<vmem>>, vector<1x1x16x128xbf16>,
    %143 = arith.truncf %121 : vector<16x128xf32> to vector<16x128xbf16>
    %c0_81 = arith.constant 0 : index
    %c3_82 = arith.constant 3 : index
    %c0_83 = arith.constant 0 : index
    %c0_84 = arith.constant 0 : index
    %144 = vector.load %arg8[%c0_81, %c3_82, %c0_83, %c0_84] : memref<1x4x16x128xbf16, #tpu.memory_space<vmem>>, vector<1x1x16x128xbf16>
    %145 = vector.shape_cast %144 : vector<1x1x16x128xbf16> to vector<16x128xbf16>
    %146 = vector.shape_cast %143 : vector<16x128xbf16> to vector<1x1x16x128xbf16>
    tpu.vector_store %arg8[%c0_81, %c3_82, %c0_83, %c0_84], %146 {strides = array<i32>} : memref<1x4x16x128xbf16, #tpu.memory_space<vmem>>, vector<1x1x16x128xbf16>,
    return
  }
  func.func @transform_0(%arg0: i32, %arg1: i32, %arg2: memref<4x3xf32, #tpu.memory_space<smem>>) -> (i32, i32, i32, i32) {
    %c0_i32 = arith.constant 0 : i32
    %c0_i32_0 = arith.constant 0 : i32
    %c0_i32_1 = arith.constant 0 : i32
    return %arg0, %c0_i32, %arg1, %c0_i32_0 : i32, i32, i32, i32
  }
  func.func @transform_1(%arg0: i32, %arg1: i32, %arg2: memref<4x3xf32, #tpu.memory_space<smem>>) -> (i32, i32, i32, i32) {
    %c0_i32 = arith.constant 0 : i32
    %c0_i32_0 = arith.constant 0 : i32
    %c0_i32_1 = arith.constant 0 : i32
    return %arg0, %c0_i32, %arg1, %c0_i32_0 : i32, i32, i32, i32
  }
  func.func @transform_2(%arg0: i32, %arg1: i32, %arg2: memref<4x3xf32, #tpu.memory_space<smem>>) -> (i32, i32, i32) {
    %c0_i32 = arith.constant 0 : i32
    %c0_i32_0 = arith.constant 0 : i32
    return %arg0, %arg1, %c0_i32 : i32, i32, i32
  }
  func.func @transform_3(%arg0: i32, %arg1: i32, %arg2: memref<4x3xf32, #tpu.memory_space<smem>>) -> (i32, i32, i32, i32) {
    %c0_i32 = arith.constant 0 : i32
    %c0_i32_0 = arith.constant 0 : i32
    %c0_i32_1 = arith.constant 0 : i32
    return %arg0, %c0_i32, %arg1, %c0_i32_0 : i32, i32, i32, i32
  }
  func.func @transform_4(%arg0: i32, %arg1: i32, %arg2: memref<4x3xf32, #tpu.memory_space<smem>>) -> (i32, i32, i32, i32) {
    %c0_i32 = arith.constant 0 : i32
    %c0_i32_0 = arith.constant 0 : i32
    %c0_i32_1 = arith.constant 0 : i32
    return %arg0, %c0_i32, %arg1, %c0_i32_0 : i32, i32, i32, i32
  }
  func.func @transform_5(%arg0: i32, %arg1: i32, %arg2: memref<4x3xf32, #tpu.memory_space<smem>>) -> (i32, i32, i32, i32) {
    %c0_i32 = arith.constant 0 : i32
    %c0_i32_0 = arith.constant 0 : i32
    %c0_i32_1 = arith.constant 0 : i32
    return %arg0, %c0_i32, %arg1, %c0_i32_0 : i32, i32, i32, i32
  }
}

</mosaic_0001>

<llo_original>
// kernel: tpu_custom_call.1
$region0: #{tpu_custom_call.1}
  #allocation0 [shape = 'u32[]', space=smem, size = 0x4, offset = 0x4, fixed_abs, tag = 'smem constant byte address 0x4 - core index']
  #allocation1 [shape = 'u32[144,128]{1,0:T(1,128)}', space=vmem, size = 0x12000, scoped, tag = 'internal scratch']
  #allocation2 [shape = 's32[1]{0}', space=sflag, size = 0x4, scoped, tag = 'scoped memory for tpu_custom_call.1']
  #allocation3 [shape = 'u8[2048]{0}', space=smem, size = 0x800, scoped, tag = 'prefetched SMEM operand 0']
  %s0 = inlined_call_operand.hbm [shape: f32[4,3], index: 0, kind: input, shape index: {}]
  %s1 = inlined_call_operand.hbm [shape: f32[2,3,16,128], index: 1, kind: input, shape index: {}]
  %s2 = inlined_call_operand.hbm [shape: bf16[2,4,16,128], index: 2, kind: output, shape index: {0}]
  %s3 = inlined_call_operand.hbm [shape: s32[2,16,128], index: 3, kind: output, shape index: {1}]
  %s4 = inlined_call_operand.hbm [shape: f32[2,1,16,128], index: 4, kind: output, shape index: {2}]
  %s5 = inlined_call_operand.hbm [shape: f32[2,1,16,128], index: 5, kind: output, shape index: {3}]
  %s6 = inlined_call_operand.hbm [shape: bf16[2,4,16,128], index: 6, kind: output, shape index: {4}]
  %7 = xla_tuple %s2, %s3, %s4, %s5, %s6
  %s8 = sld [smem:[#allocation0]]
  $region73: #{tpu_custom_call.1} parent=0
    _
  %s10 = ssub.s32 1, %s8
  %s11 = scalar_select 0, %s10, %s8
  %13 = dma.hbm_to_smem %s0, 64, [#allocation3], [#allocation2]
  %14 = dma.done [#allocation2], 64
  %15 = sfence
  $region1: #{tpu_custom_call.1} parent=0
    #allocation4 [shape = 'u8[49152]{0}', space=vmem, size = 0xc000, scoped, tag = 'input window, operand 1']
    #allocation5 [shape = 's32[2]{0}', space=sflag, size = 0x8, scoped, tag = 'scoped memory for tpu_custom_call.1']
    #allocation6 [shape = 's32[2]{0}', space=sflag, size = 0x8, scoped, tag = 'scoped memory for tpu_custom_call.1']
    #allocation7 [shape = 'u8[32768]{0}', space=vmem, size = 0x8000, scoped, tag = 'output window, operand 0']
    #allocation8 [shape = 'u8[16384]{0}', space=vmem, size = 0x4000, scoped, tag = 'output window, operand 1']
    #allocation9 [shape = 's32[2]{0}', space=sflag, size = 0x8, scoped, tag = 'scoped memory for tpu_custom_call.1']
    #allocation10 [shape = 'u8[16384]{0}', space=vmem, size = 0x4000, scoped, tag = 'output window, operand 2']
    #allocation11 [shape = 'u8[16384]{0}', space=vmem, size = 0x4000, scoped, tag = 'output window, operand 3']
    #allocation12 [shape = 's32[2]{0}', space=sflag, size = 0x8, scoped, tag = 'scoped memory for tpu_custom_call.1']
    #allocation13 [shape = 'u8[32768]{0}', space=vmem, size = 0x8000, scoped, tag = 'output window, operand 4']
    %16 = vsyncpa [#allocation5], 0
    %s17 = scalar_lea.sflag [#allocation5], 1
    %18 = vsyncpa %s17, 0
    %19 = vsyncpa [#allocation6], 0
    %s20 = scalar_lea.sflag [#allocation6], 1
    %21 = vsyncpa %s20, 0
    %22 = vsyncpa [#allocation9], 0
    %s23 = scalar_lea.sflag [#allocation9], 1
    %24 = vsyncpa %s23, 0
    %25 = vsyncpa [#allocation12], 0
    %s26 = scalar_lea.sflag [#allocation12], 1
    %27 = vsyncpa %s26, 0
    loop: start=0, step=1, limit=4
    $region2: #{tpu_custom_call.1} parent=1 // loop_pre_header
      _
    $region3: #{tpu_custom_call.1} parent=1 // loop_header
      %s29 = sphi 0, %s33
      %p30 = scmp.ge.s32.totalorder %s29, 4
      %s36 = sphi 0, %s48
      %s37 = sphi 0, %s44
      %s38 = sphi 0, %s36
      %s39 = sphi 0, %s37
      %s40 = sphi 0, %s38
      %s41 = sphi 0, %s39
      %s53 = sphi 0, %s55
      %s56 = sphi 0, %s53
      %s57 = sphi 0, %s56
      %s73 = sphi 0, %s57
      %s81 = sphi 0, %s83
      %s84 = sphi 0, %s81
      %s85 = sphi 0, %s84
      %s101 = sphi 0, %s85
      %s109 = sphi 0, %s111
      %s112 = sphi 0, %s109
      %s113 = sphi 0, %s112
      %s129 = sphi 0, %s113
      %s137 = sphi 0, %s139
      %s140 = sphi 0, %s137
      %s141 = sphi 0, %s140
      %s157 = sphi 0, %s141
      %s165 = sphi 0, %s167
      %s168 = sphi 0, %s165
      %s169 = sphi 0, %s168
      %s185 = sphi 0, %s169
      %s193 = sphi 0, %s195
      %s196 = sphi 0, %s193
      %s197 = sphi 0, %s196
      %s213 = sphi 0, %s197
    $region4: #{tpu_custom_call.1} parent=1 // loop_header_branch
      %32 = sbr.rel (%p30) target = $region8
    $region5: #{tpu_custom_call.1} parent=1 // loop_body
      %s34 = ssub.s32 %s29, 1
      %s35 = ssub.s32 %s29, 2
      %s42 = sadd.s32 1, %s37
      %p43 = scmp.ge.s32.totalorder %s42, 1
      %s44 = scalar_select %p43, 0, %s42
      %s45 = sadd.s32 1, %s36
      %s46 = scalar_select %p43, %s45, %s36
      %p47 = scmp.ge.s32.totalorder %s46, 2
      %s48 = scalar_select %p47, 0, %s46
      %s49 = ssub.s32 %s36, %s48
      %s50 = ssub.s32 %s37, %s44
      %s51 = sor.u32 %s49, %s50
      %p52 = scmp.eq.s32.totalorder %s51, 0
      %s54 = sadd.s32 %s53, 1
      %s55 = scalar_select %p52, %s53, %s54
      %p58 = pneg %p52
      %p59 = scmp.eq.s32.totalorder %s29, 1
      %p60 = por %p58, %p59
      %p61 = scmp.ne.s32.totalorder %s53, %s56
      %p62 = scmp.eq.s32.totalorder %s29, 0
      %p63 = por %p61, %p62
      %p64 = scmp.ne.s32.totalorder %s53, %s56
      %p65 = scmp.eq.s32.totalorder %s34, 1
      %p66 = por %p64, %p65
      %p67 = scmp.ne.s32.totalorder %s56, %s57
      %p68 = scmp.eq.s32.totalorder %s34, 0
      %p69 = por %p67, %p68
      %p70 = scmp.ne.s32.totalorder %s56, %s57
      %p71 = scmp.eq.s32.totalorder %s35, 1
      %p72 = por %p70, %p71
      %p74 = scmp.ne.s32.totalorder %s57, %s73
      %p75 = scmp.eq.s32.totalorder %s35, 0
      %p76 = por %p74, %p75
      %s77 = ssub.s32 %s36, %s48
      %s78 = ssub.s32 %s37, %s44
      %s79 = sor.u32 %s77, %s78
      %p80 = scmp.eq.s32.totalorder %s79, 0
      %s82 = sadd.s32 %s81, 1
      %s83 = scalar_select %p80, %s81, %s82
      %p86 = pneg %p80
      %p87 = scmp.eq.s32.totalorder %s29, 1
      %p88 = por %p86, %p87
      %p89 = scmp.ne.s32.totalorder %s81, %s84
      %p90 = scmp.eq.s32.totalorder %s29, 0
      %p91 = por %p89, %p90
      %p92 = scmp.ne.s32.totalorder %s81, %s84
      %p93 = scmp.eq.s32.totalorder %s34, 1
      %p94 = por %p92, %p93
      %p95 = scmp.ne.s32.totalorder %s84, %s85
      %p96 = scmp.eq.s32.totalorder %s34, 0
      %p97 = por %p95, %p96
      %p98 = scmp.ne.s32.totalorder %s84, %s85
      %p99 = scmp.eq.s32.totalorder %s35, 1
      %p100 = por %p98, %p99
      %p102 = scmp.ne.s32.totalorder %s85, %s101
      %p103 = scmp.eq.s32.totalorder %s35, 0
      %p104 = por %p102, %p103
      %s105 = ssub.s32 %s36, %s48
      %s106 = ssub.s32 %s37, %s44
      %s107 = sor.u32 %s105, %s106
      %p108 = scmp.eq.s32.totalorder %s107, 0
      %s110 = sadd.s32 %s109, 1
      %s111 = scalar_select %p108, %s109, %s110
      %p114 = pneg %p108
      %p115 = scmp.eq.s32.totalorder %s29, 1
      %p116 = por %p114, %p115
      %p117 = scmp.ne.s32.totalorder %s109, %s112
      %p118 = scmp.eq.s32.totalorder %s29, 0
      %p119 = por %p117, %p118
      %p120 = scmp.ne.s32.totalorder %s109, %s112
      %p121 = scmp.eq.s32.totalorder %s34, 1
      %p122 = por %p120, %p121
      %p123 = scmp.ne.s32.totalorder %s112, %s113
      %p124 = scmp.eq.s32.totalorder %s34, 0
      %p125 = por %p123, %p124
      %p126 = scmp.ne.s32.totalorder %s112, %s113
      %p127 = scmp.eq.s32.totalorder %s35, 1
      %p128 = por %p126, %p127
      %p130 = scmp.ne.s32.totalorder %s113, %s129
      %p131 = scmp.eq.s32.totalorder %s35, 0
      %p132 = por %p130, %p131
      %s133 = ssub.s32 %s36, %s48
      %s134 = ssub.s32 %s37, %s44
      %s135 = sor.u32 %s133, %s134
      %p136 = scmp.eq.s32.totalorder %s135, 0
      %s138 = sadd.s32 %s137, 1
      %s139 = scalar_select %p136, %s137, %s138
      %p142 = pneg %p136
      %p143 = scmp.eq.s32.totalorder %s29, 1
      %p144 = por %p142, %p143
      %p145 = scmp.ne.s32.totalorder %s137, %s140
      %p146 = scmp.eq.s32.totalorder %s29, 0
      %p147 = por %p145, %p146
      %p148 = scmp.ne.s32.totalorder %s137, %s140
      %p149 = scmp.eq.s32.totalorder %s34, 1
      %p150 = por %p148, %p149
      %p151 = scmp.ne.s32.totalorder %s140, %s141
      %p152 = scmp.eq.s32.totalorder %s34, 0
      %p153 = por %p151, %p152
      %p154 = scmp.ne.s32.totalorder %s140, %s141
      %p155 = scmp.eq.s32.totalorder %s35, 1
      %p156 = por %p154, %p155
      %p158 = scmp.ne.s32.totalorder %s141, %s157
      %p159 = scmp.eq.s32.totalorder %s35, 0
      %p160 = por %p158, %p159
      %s161 = ssub.s32 %s36, %s48
      %s162 = ssub.s32 %s37, %s44
      %s163 = sor.u32 %s161, %s162
      %p164 = scmp.eq.s32.totalorder %s163, 0
      %s166 = sadd.s32 %s165, 1
      %s167 = scalar_select %p164, %s165, %s166
      %p170 = pneg %p164
      %p171 = scmp.eq.s32.totalorder %s29, 1
      %p172 = por %p170, %p171
      %p173 = scmp.ne.s32.totalorder %s165, %s168
      %p174 = scmp.eq.s32.totalorder %s29, 0
      %p175 = por %p173, %p174
      %p176 = scmp.ne.s32.totalorder %s165, %s168
      %p177 = scmp.eq.s32.totalorder %s34, 1
      %p178 = por %p176, %p177
      %p179 = scmp.ne.s32.totalorder %s168, %s169
      %p180 = scmp.eq.s32.totalorder %s34, 0
      %p181 = por %p179, %p180
      %p182 = scmp.ne.s32.totalorder %s168, %s169
      %p183 = scmp.eq.s32.totalorder %s35, 1
      %p184 = por %p182, %p183
      %p186 = scmp.ne.s32.totalorder %s169, %s185
      %p187 = scmp.eq.s32.totalorder %s35, 0
      %p188 = por %p186, %p187
      %s189 = ssub.s32 %s36, %s48
      %s190 = ssub.s32 %s37, %s44
      %s191 = sor.u32 %s189, %s190
      %p192 = scmp.eq.s32.totalorder %s191, 0
      %s194 = sadd.s32 %s193, 1
      %s195 = scalar_select %p192, %s193, %s194
      %p198 = pneg %p192
      %p199 = scmp.eq.s32.totalorder %s29, 1
      %p200 = por %p198, %p199
      %p201 = scmp.ne.s32.totalorder %s193, %s196
      %p202 = scmp.eq.s32.totalorder %s29, 0
      %p203 = por %p201, %p202
      %p204 = scmp.ne.s32.totalorder %s193, %s196
      %p205 = scmp.eq.s32.totalorder %s34, 1
      %p206 = por %p204, %p205
      %p207 = scmp.ne.s32.totalorder %s196, %s197
      %p208 = scmp.eq.s32.totalorder %s34, 0
      %p209 = por %p207, %p208
      %p210 = scmp.ne.s32.totalorder %s196, %s197
      %p211 = scmp.eq.s32.totalorder %s35, 1
      %p212 = por %p210, %p211
      %p214 = scmp.ne.s32.totalorder %s197, %s213
      %p215 = scmp.eq.s32.totalorder %s35, 0
      %p216 = por %p214, %p215
      %p217 = scmp.le.s32.totalorder 1, %s29
      %p218 = scmp.lt.s32.totalorder %s29, 3
      %p219 = pnand %p217, %p218
      %p220 = pneg %p219
      // Predicated region
      $region9: #{tpu_custom_call.1} parent=5 // pred_check
        _
      $region10: #{tpu_custom_call.1} parent=5 // pred_check_branch
        %222 = sbr.rel (%p219) target = $region12
      $region11: #{tpu_custom_call.1} parent=5 // pred_region
        %s223 = ssub.s32 %s29, 1
      $region12: #{tpu_custom_call.1} parent=5 // pred_fallthru
        _
      %p224 = scmp.lt.s32.totalorder %s29, 2
      // Predicated region
      $region13: #{tpu_custom_call.1} parent=5 // pred_check
        %p225 = pneg %p224
      $region14: #{tpu_custom_call.1} parent=5 // pred_check_branch
        %227 = sbr.rel (%p225) target = $region16
      $region15: #{tpu_custom_call.1} parent=5 // pred_region
        // Predicated region
        $region17: #{tpu_custom_call.1} parent=15 // pred_check
          %p228 = pneg %p63
        $region18: #{tpu_custom_call.1} parent=15 // pred_check_branch
          %230 = sbr.rel (%p228) target = $region20
        $region19: #{tpu_custom_call.1} parent=15 // pred_region
          %s231 = sand.u32 %s53, 1
          %s232 = scalar_lea.sflag [#allocation5], %s231
          %s233 = sand.u32 %s53, 1
          %s234 = smul.addr %s233, 48
          %s235 = scalar_lea.vmem [#allocation4], %s234
          %s236 = smul.u32 2, %s37
          %s238 = ssub.s32 768, 768
          %239 = vsyncadd %s232, %s238
          %s240 = smul.addr %s36, 6
          %s241 = sadd.s32 %s236, %s240
          %s242 = smul.addr %s241, 128
          %s243 = scalar_lea.hbm %s1, %s242
          %s244 = sshll.u32 %s235, 4
          %s245 = int_to_ptr.vmem [resolvable:$true] %s244
          %250 = dma.hbm_to_vmem [thread:$0]  %s243, 768, %s245, %s232, 128, 128, 8
        $region20: #{tpu_custom_call.1} parent=15 // pred_fallthru
          _
      $region16: #{tpu_custom_call.1} parent=5 // pred_fallthru
        _
      %p251 = scmp.le.s32.totalorder 1, %s29
      %p252 = scmp.lt.s32.totalorder %s29, 3
      %p253 = pnand %p251, %p252
      %p254 = pneg %p253
      // Predicated region
      $region21: #{tpu_custom_call.1} parent=5 // pred_check
        _
      $region22: #{tpu_custom_call.1} parent=5 // pred_check_branch
        %256 = sbr.rel (%p253) target = $region24
      $region23: #{tpu_custom_call.1} parent=5 // pred_region
        %s257 = ssub.s32 %s29, 1
        %s258 = sand.u32 %s56, 1
        %s259 = scalar_lea.sflag [#allocation5], %s258
        %s260 = sand.u32 %s56, 1
        %s261 = smul.addr %s260, 48
        %s262 = scalar_lea.vmem [#allocation4], %s261
        // Predicated region
        $region25: #{tpu_custom_call.1} parent=23 // pred_check
          %p263 = pneg %p69
        $region26: #{tpu_custom_call.1} parent=23 // pred_check_branch
          %265 = sbr.rel (%p263) target = $region28
        $region27: #{tpu_custom_call.1} parent=23 // pred_region
          %266 = dma.done %s259, 768
        $region28: #{tpu_custom_call.1} parent=23 // pred_fallthru
          _
        %s267 = sand.u32 %s56, 1
        %s268 = scalar_lea.sflag [#allocation5], %s267
        %s269 = sand.u32 %s56, 1
        %s270 = smul.addr %s269, 48
        %s271 = scalar_lea.vmem [#allocation4], %s270
        %p272 = pneg %p69
        %p273 = pneg %p66
        %p274 = pneg %p97
        %p275 = pneg %p94
        %s276 = sand.u32 %s84, 1
        %s277 = scalar_lea.sflag [#allocation6], %s276
        %s278 = sand.u32 %s84, 1
        %s279 = smul.addr %s278, 32
        %s280 = scalar_lea.vmem [#allocation7], %s279
        %p281 = pneg %p125
        %p282 = pneg %p122
        %s283 = sand.u32 %s34, 1
        %s284 = scalar_lea.sflag [#allocation9], %s283
        %s285 = sand.u32 %s112, 1
        %s286 = smul.addr %s285, 16
        %s287 = scalar_lea.vmem [#allocation8], %s286
        %p288 = pneg %p153
        %p289 = pneg %p150
        %s290 = sand.u32 %s34, 1
        %s291 = scalar_lea.sflag [#allocation9], %s290
        %s292 = sand.u32 %s140, 1
        %s293 = smul.addr %s292, 16
        %s294 = scalar_lea.vmem [#allocation10], %s293
        %p295 = pneg %p181
        %p296 = pneg %p178
        %s297 = sand.u32 %s34, 1
        %s298 = scalar_lea.sflag [#allocation12], %s297
        %s299 = sand.u32 %s168, 1
        %s300 = smul.addr %s299, 16
        %s301 = scalar_lea.vmem [#allocation11], %s300
        %p302 = pneg %p209
        %p303 = pneg %p206
        %s304 = sand.u32 %s34, 1
        %s305 = scalar_lea.sflag [#allocation12], %s304
        %s306 = sand.u32 %s196, 1
        %s307 = smul.addr %s306, 32
        %s308 = scalar_lea.vmem [#allocation13], %s307
        %s309 = smul.u32 2, %s39
        %s310 = smul.u32 2, %s39
        %s311 = smul.u32 2, %s39
        %s312 = smul.u32 2, %s39
        %s313 = smul.u32 2, %s39
        %s314 = smul.u32 2, %s39
        %v315 = vld [vmem:[%s262] sm:$0xff]
        %v316 = vld [vmem:[%s262 + $0x8] sm:$0xff]
        %s317 = scalar_lea.vmem %s262, 16 [#allocation4]
        %v318 = vld [vmem:[%s317] sm:$0xff]
        %v319 = vld [vmem:[%s317 + $0x8] sm:$0xff]
        %s320 = scalar_lea.vmem %s262, 32 [#allocation4]
        %v321 = vld [vmem:[%s320] sm:$0xff]
        %v322 = vld [vmem:[%s320 + $0x8] sm:$0xff]
        %s323 = sld [smem:[#allocation3]]
        %v324 = vstv %s323
        %v325 = vmul.f32 %v324, %v315
        %v326 = vmul.f32 %v324, %v316
        %s327 = sld [smem:[#allocation3 + $0x1]]
        %v328 = vstv %s327
        %v329 = vmul.f32 %v328, %v318
        %v330 = vmul.f32 %v328, %v319
        %v331 = vadd.f32 %v325, %v329
        %v332 = vadd.f32 %v326, %v330
        %s333 = sld [smem:[#allocation3 + $0x2]]
        %v334 = vstv %s333
        %v335 = vmul.f32 %v334, %v321
        %v336 = vmul.f32 %v334, %v322
        %v337 = vadd.f32 %v331, %v335
        %v338 = vadd.f32 %v332, %v336
        %v339 = vpack.c.bf16 %v338, %v337
        %v341 = vunpack.c.l.b16 %v339
        %v342 = vunpack.c.h.b16 %v339
        %v343 = vpack.c.b16 %v341, %v341
        %v344 = vpack.c.b16 %v342, %v342
        %347 = vst [vmem:[%s280] sm:$0xf] %v343
        %348 = vst [vmem:[%s280 + $0x4] sm:$0xf] %v344
        %s349 = sld [smem:[#allocation3 + $0x80]]
        %v350 = vstv %s349
        %v351 = vmul.f32 %v350, %v315
        %v352 = vmul.f32 %v350, %v316
        %s353 = sld [smem:[#allocation3 + $0x81]]
        %v354 = vstv %s353
        %v355 = vmul.f32 %v354, %v318
        %v356 = vmul.f32 %v354, %v319
        %v357 = vadd.f32 %v351, %v355
        %v358 = vadd.f32 %v352, %v356
        %s359 = sld [smem:[#allocation3 + $0x82]]
        %v360 = vstv %s359
        %v361 = vmul.f32 %v360, %v321
        %v362 = vmul.f32 %v360, %v322
        %v363 = vadd.f32 %v357, %v361
        %v364 = vadd.f32 %v358, %v362
        %v365 = vpack.c.bf16 %v364, %v363
        %v367 = vunpack.c.l.b16 %v365
        %v368 = vunpack.c.h.b16 %v365
        %v369 = vpack.c.b16 %v367, %v367
        %v370 = vpack.c.b16 %v368, %v368
        %s373 = scalar_lea.vmem %s280, 8 [#allocation7]
        %374 = vst [vmem:[%s373] sm:$0xf] %v369
        %375 = vst [vmem:[%s373 + $0x4] sm:$0xf] %v370
        %s376 = sld [smem:[#allocation3 + $0x100]]
        %v377 = vstv %s376
        %v378 = vmul.f32 %v377, %v315
        %v379 = vmul.f32 %v377, %v316
        %s380 = sld [smem:[#allocation3 + $0x101]]
        %v381 = vstv %s380
        %v382 = vmul.f32 %v381, %v318
        %v383 = vmul.f32 %v381, %v319
        %v384 = vadd.f32 %v378, %v382
        %v385 = vadd.f32 %v379, %v383
        %s386 = sld [smem:[#allocation3 + $0x102]]
        %v387 = vstv %s386
        %v388 = vmul.f32 %v387, %v321
        %v389 = vmul.f32 %v387, %v322
        %v390 = vadd.f32 %v384, %v388
        %v391 = vadd.f32 %v385, %v389
        %v392 = vpack.c.bf16 %v391, %v390
        %v394 = vunpack.c.l.b16 %v392
        %v395 = vunpack.c.h.b16 %v392
        %v396 = vpack.c.b16 %v394, %v394
        %v397 = vpack.c.b16 %v395, %v395
        %s400 = scalar_lea.vmem %s280, 16 [#allocation7]
        %401 = vst [vmem:[%s400] sm:$0xf] %v396
        %402 = vst [vmem:[%s400 + $0x4] sm:$0xf] %v397
        %s403 = sld [smem:[#allocation3 + $0x180]]
        %v404 = vstv %s403
        %v405 = vmul.f32 %v404, %v315
        %v406 = vmul.f32 %v404, %v316
        %s407 = sld [smem:[#allocation3 + $0x181]]
        %v408 = vstv %s407
        %v409 = vmul.f32 %v408, %v318
        %v410 = vmul.f32 %v408, %v319
        %v411 = vadd.f32 %v405, %v409
        %v412 = vadd.f32 %v406, %v410
        %s413 = sld [smem:[#allocation3 + $0x182]]
        %v414 = vstv %s413
        %v415 = vmul.f32 %v414, %v321
        %v416 = vmul.f32 %v414, %v322
        %v417 = vadd.f32 %v411, %v415
        %v418 = vadd.f32 %v412, %v416
        %v419 = vpack.c.bf16 %v418, %v417
        %v421 = vunpack.c.l.b16 %v419
        %v422 = vunpack.c.h.b16 %v419
        %v423 = vpack.c.b16 %v421, %v421
        %v424 = vpack.c.b16 %v422, %v422
        %s427 = scalar_lea.vmem %s280, 24 [#allocation7]
        %428 = vst [vmem:[%s427] sm:$0xf] %v423
        %429 = vst [vmem:[%s427 + $0x4] sm:$0xf] %v424
        %vm430 = vcmp.gt.f32.partialorder %v363, %v337
        %vm431 = vcmp.gt.f32.partialorder %v364, %v338
        %v432 = vsel %vm430, %v363, %v337
        %v433 = vsel %vm431, %v364, %v338
        %v434 = vsel %vm430, 1, 0
        %v435 = vsel %vm431, 1, 0
        %vm436 = vcmp.gt.f32.partialorder %v390, %v432
        %vm437 = vcmp.gt.f32.partialorder %v391, %v433
        %v438 = vsel %vm436, %v390, %v432
        %v439 = vsel %vm437, %v391, %v433
        %v440 = vsel %vm436, 2, %v434
        %v441 = vsel %vm437, 2, %v435
        %vm442 = vcmp.gt.f32.partialorder %v417, %v438
        %vm443 = vcmp.gt.f32.partialorder %v418, %v439
        %v444 = vsel %vm442, %v417, %v438
        %v445 = vsel %vm443, %v418, %v439
        %v446 = vsel %vm442, 3, %v440
        %v447 = vsel %vm443, 3, %v441
        %v448 = vcvt.s32.f32 %v446
        %v449 = vcvt.s32.f32 %v447
        %v450 = vmul.f32 %v448, 2.375
        %v451 = vmul.f32 %v449, 2.375
        %v452 = vadd.f32 %v450, 1.6875
        %v453 = vadd.f32 %v451, 1.6875
        %v454 = vsub.f32 %v337, %v444
        %v455 = vsub.f32 %v338, %v445
        %v456 = vmul.f32 %v454, 1.442695
        %v457 = vpow.pop %v456
        %v458 = vmul.f32 %v455, 1.442695
        %v459 = vpow.pop %v458
        %v460 = vadd.f32 %v457, 0.0
        %v461 = vadd.f32 %v459, 0.0
        %v462 = vsub.f32 %v363, %v444
        %v463 = vsub.f32 %v364, %v445
        %v464 = vmul.f32 %v462, 1.442695
        %v465 = vpow.pop %v464
        %v466 = vmul.f32 %v463, 1.442695
        %v467 = vpow.pop %v466
        %v468 = vadd.f32 %v460, %v465
        %v469 = vadd.f32 %v461, %v467
        %v470 = vsub.f32 %v390, %v444
        %v471 = vsub.f32 %v391, %v445
        %v472 = vmul.f32 %v470, 1.442695
        %v473 = vpow.pop %v472
        %v474 = vmul.f32 %v471, 1.442695
        %v475 = vpow.pop %v474
        %v476 = vadd.f32 %v468, %v473
        %v477 = vadd.f32 %v469, %v475
        %v478 = vsub.f32 %v417, %v444
        %v479 = vsub.f32 %v418, %v445
        %v480 = vmul.f32 %v478, 1.442695
        %v481 = vpow.pop %v480
        %v482 = vmul.f32 %v479, 1.442695
        %v483 = vpow.pop %v482
        %v484 = vadd.f32 %v476, %v481
        %v485 = vadd.f32 %v477, %v483
        %v486 = vrcp.pop %v484
        %v487 = vrcp.pop %v485
        %v488 = vadd.f32 %v452, -1.78125
        %v489 = vadd.f32 %v453, -1.78125
        %v490 = vadd.f32 %v452, -0.59375
        %v491 = vadd.f32 %v453, -0.59375
        %v492 = vadd.f32 %v452, 0.59375
        %v493 = vadd.f32 %v453, 0.59375
        %v494 = vadd.f32 %v452, 1.78125
        %v495 = vadd.f32 %v453, 1.78125
        %v496 = vsub.f32 0.5, %v488
        %v497 = vsub.f32 0.5, %v489
        %v498 = vmax.f32 %v496, 0.0
        %v499 = vmax.f32 %v497, 0.0
        %v500 = vadd.f32 %v488, %v498
        %v501 = vadd.f32 %v489, %v499
        %v502 = vadd.f32 %v490, %v498
        %v503 = vadd.f32 %v491, %v499
        %v504 = vadd.f32 %v492, %v498
        %v505 = vadd.f32 %v493, %v499
        %v506 = vadd.f32 %v494, %v498
        %v507 = vadd.f32 %v495, %v499
        %v508 = vsub.f32 %v506, 10.0
        %v509 = vsub.f32 %v507, 10.0
        %v510 = vmax.f32 %v508, 0.0
        %v511 = vmax.f32 %v509, 0.0
        %v512 = vsub.f32 %v500, %v510
        %v513 = vsub.f32 %v501, %v511
        %v514 = vsub.f32 %v502, %v510
        %v515 = vsub.f32 %v503, %v511
        %v516 = vsub.f32 %v504, %v510
        %v517 = vsub.f32 %v505, %v511
        %v518 = vsub.f32 %v506, %v510
        %v519 = vsub.f32 %v507, %v511
        %520 = vst [vmem:[%s287] sm:$0xff] %v446
        %521 = vst [vmem:[%s287 + $0x8] sm:$0xff] %v447
        %522 = vst [vmem:[%s294] sm:$0xff] %v452
        %523 = vst [vmem:[%s294 + $0x8] sm:$0xff] %v453
        %524 = vst [vmem:[%s301] sm:$0xff] %v486
        %525 = vst [vmem:[%s301 + $0x8] sm:$0xff] %v487
        %v526 = vpack.c.bf16 %v513, %v512
        %v528 = vunpack.c.l.b16 %v526
        %v529 = vunpack.c.h.b16 %v526
        %v530 = vpack.c.b16 %v528, %v528
        %v531 = vpack.c.b16 %v529, %v529
        %534 = vst [vmem:[%s308] sm:$0xf] %v530
        %535 = vst [vmem:[%s308 + $0x4] sm:$0xf] %v531
        %v536 = vpack.c.bf16 %v515, %v514
        %v538 = vunpack.c.l.b16 %v536
        %v539 = vunpack.c.h.b16 %v536
        %v540 = vpack.c.b16 %v538, %v538
        %v541 = vpack.c.b16 %v539, %v539
        %s544 = scalar_lea.vmem %s308, 8 [#allocation13]
        %545 = vst [vmem:[%s544] sm:$0xf] %v540
        %546 = vst [vmem:[%s544 + $0x4] sm:$0xf] %v541
        %v547 = vpack.c.bf16 %v517, %v516
        %v549 = vunpack.c.l.b16 %v547
        %v550 = vunpack.c.h.b16 %v547
        %v551 = vpack.c.b16 %v549, %v549
        %v552 = vpack.c.b16 %v550, %v550
        %s555 = scalar_lea.vmem %s308, 16 [#allocation13]
        %556 = vst [vmem:[%s555] sm:$0xf] %v551
        %557 = vst [vmem:[%s555 + $0x4] sm:$0xf] %v552
        %v558 = vpack.c.bf16 %v519, %v518
        %v560 = vunpack.c.l.b16 %v558
        %v561 = vunpack.c.h.b16 %v558
        %v562 = vpack.c.b16 %v560, %v560
        %v563 = vpack.c.b16 %v561, %v561
        %s566 = scalar_lea.vmem %s308, 24 [#allocation13]
        %567 = vst [vmem:[%s566] sm:$0xf] %v562
        %568 = vst [vmem:[%s566 + $0x4] sm:$0xf] %v563
        %s569 = sand.u32 %s84, 1
        %s570 = scalar_lea.sflag [#allocation6], %s569
        %s571 = sand.u32 %s84, 1
        %s572 = smul.addr %s571, 32
        %s573 = scalar_lea.vmem [#allocation7], %s572
        %s574 = sand.u32 %s34, 1
        %s575 = scalar_lea.sflag [#allocation9], %s574
        %s576 = sand.u32 %s112, 1
        %s577 = smul.addr %s576, 16
        %s578 = scalar_lea.vmem [#allocation8], %s577
        %s579 = sand.u32 %s34, 1
        %s580 = scalar_lea.sflag [#allocation9], %s579
        %s581 = sand.u32 %s140, 1
        %s582 = smul.addr %s581, 16
        %s583 = scalar_lea.vmem [#allocation10], %s582
        %s584 = sand.u32 %s34, 1
        %s585 = scalar_lea.sflag [#allocation12], %s584
        %s586 = sand.u32 %s168, 1
        %s587 = smul.addr %s586, 16
        %s588 = scalar_lea.vmem [#allocation11], %s587
        %s589 = sand.u32 %s34, 1
        %s590 = scalar_lea.sflag [#allocation12], %s589
        %s591 = sand.u32 %s196, 1
        %s592 = smul.addr %s591, 32
        %s593 = scalar_lea.vmem [#allocation13], %s592
        // Predicated region
        $region29: #{tpu_custom_call.1} parent=23 // pred_check
          %p594 = pneg %p94
        $region30: #{tpu_custom_call.1} parent=23 // pred_check_branch
          %596 = sbr.rel (%p594) target = $region32
        $region31: #{tpu_custom_call.1} parent=23 // pred_region
          %s597 = smul.u32 2, %s39
          %s599 = ssub.s32 512, 512
          %600 = vsyncadd %s570, %s599
          %s601 = smul.addr %s38, 8
          %s602 = sadd.s32 %s597, %s601
          %s603 = smul.addr %s602, 64
          %s604 = scalar_lea.hbm %s2, %s603
          %s605 = sshll.u32 %s573, 4
          %s606 = int_to_ptr.vmem [resolvable:$true] %s605
          %611 = dma.vmem_to_hbm [thread:$0]  %s606, 512, %s604, %s570, 64, 64, 4
        $region32: #{tpu_custom_call.1} parent=23 // pred_fallthru
          _
        // Predicated region
        $region33: #{tpu_custom_call.1} parent=23 // pred_check
          %p612 = pneg %p122
        $region34: #{tpu_custom_call.1} parent=23 // pred_check_branch
          %614 = sbr.rel (%p612) target = $region36
        $region35: #{tpu_custom_call.1} parent=23 // pred_region
          %s615 = smul.u32 2, %s39
          %s617 = ssub.s32 256, 256
          %618 = vsyncadd %s575, %s617
          %s619 = smul.addr %s38, 2
          %s620 = sadd.s32 %s615, %s619
          %s621 = smul.addr %s620, 128
          %s622 = scalar_lea.hbm %s3, %s621
          %s623 = sshll.u32 %s578, 4
          %s624 = int_to_ptr.vmem [resolvable:$true] %s623
          %629 = dma.vmem_to_hbm [thread:$0]  %s624, 256, %s622, %s575, 128, 128, 8
        $region36: #{tpu_custom_call.1} parent=23 // pred_fallthru
          _
        // Predicated region
        $region37: #{tpu_custom_call.1} parent=23 // pred_check
          %p630 = pneg %p150
        $region38: #{tpu_custom_call.1} parent=23 // pred_check_branch
          %632 = sbr.rel (%p630) target = $region40
        $region39: #{tpu_custom_call.1} parent=23 // pred_region
          %s633 = smul.u32 2, %s39
          %s635 = ssub.s32 256, 256
          %636 = vsyncadd %s580, %s635
          %s637 = smul.addr %s38, 2
          %s638 = sadd.s32 %s633, %s637
          %s639 = smul.addr %s638, 128
          %s640 = scalar_lea.hbm %s4, %s639
          %s641 = sshll.u32 %s583, 4
          %s642 = int_to_ptr.vmem [resolvable:$true] %s641
          %647 = dma.vmem_to_hbm [thread:$0]  %s642, 256, %s640, %s580, 128, 128, 8
        $region40: #{tpu_custom_call.1} parent=23 // pred_fallthru
          _
        // Predicated region
        $region41: #{tpu_custom_call.1} parent=23 // pred_check
          %p648 = pneg %p178
        $region42: #{tpu_custom_call.1} parent=23 // pred_check_branch
          %650 = sbr.rel (%p648) target = $region44
        $region43: #{tpu_custom_call.1} parent=23 // pred_region
          %s651 = smul.u32 2, %s39
          %s653 = ssub.s32 256, 256
          %654 = vsyncadd %s585, %s653
          %s655 = smul.addr %s38, 2
          %s656 = sadd.s32 %s651, %s655
          %s657 = smul.addr %s656, 128
          %s658 = scalar_lea.hbm %s5, %s657
          %s659 = sshll.u32 %s588, 4
          %s660 = int_to_ptr.vmem [resolvable:$true] %s659
          %665 = dma.vmem_to_hbm [thread:$0]  %s660, 256, %s658, %s585, 128, 128, 8
        $region44: #{tpu_custom_call.1} parent=23 // pred_fallthru
          _
        // Predicated region
        $region45: #{tpu_custom_call.1} parent=23 // pred_check
          %p666 = pneg %p206
        $region46: #{tpu_custom_call.1} parent=23 // pred_check_branch
          %668 = sbr.rel (%p666) target = $region48
        $region47: #{tpu_custom_call.1} parent=23 // pred_region
          %s669 = smul.u32 2, %s39
          %s671 = ssub.s32 512, 512
          %672 = vsyncadd %s590, %s671
          %s673 = smul.addr %s38, 8
          %s674 = sadd.s32 %s669, %s673
          %s675 = smul.addr %s674, 64
          %s676 = scalar_lea.hbm %s6, %s675
          %s677 = sshll.u32 %s593, 4
          %s678 = int_to_ptr.vmem [resolvable:$true] %s677
          %683 = dma.vmem_to_hbm [thread:$0]  %s678, 512, %s676, %s590, 64, 64, 4
        $region48: #{tpu_custom_call.1} parent=23 // pred_fallthru
          _
      $region24: #{tpu_custom_call.1} parent=5 // pred_fallthru
        _
      %p684 = scmp.le.s32.totalorder 2, %s29
      // Predicated region
      $region49: #{tpu_custom_call.1} parent=5 // pred_check
        %p685 = pneg %p684
      $region50: #{tpu_custom_call.1} parent=5 // pred_check_branch
        %687 = sbr.rel (%p685) target = $region52
      $region51: #{tpu_custom_call.1} parent=5 // pred_region
        %s688 = ssub.s32 %s29, 2
        // Predicated region
        $region53: #{tpu_custom_call.1} parent=51 // pred_check
          %p689 = pneg %p100
        $region54: #{tpu_custom_call.1} parent=51 // pred_check_branch
          %691 = sbr.rel (%p689) target = $region56
        $region55: #{tpu_custom_call.1} parent=51 // pred_region
          %s692 = sand.u32 %s85, 1
          %s693 = scalar_lea.sflag [#allocation6], %s692
          %s694 = sand.u32 %s85, 1
          %s695 = smul.addr %s694, 32
          %s696 = scalar_lea.vmem [#allocation7], %s695
          %697 = dma.done %s693, 512
        $region56: #{tpu_custom_call.1} parent=51 // pred_fallthru
          _
        // Predicated region
        $region57: #{tpu_custom_call.1} parent=51 // pred_check
          %p698 = pneg %p128
        $region58: #{tpu_custom_call.1} parent=51 // pred_check_branch
          %700 = sbr.rel (%p698) target = $region60
        $region59: #{tpu_custom_call.1} parent=51 // pred_region
          %s701 = sand.u32 %s35, 1
          %s702 = scalar_lea.sflag [#allocation9], %s701
          %s703 = sand.u32 %s113, 1
          %s704 = smul.addr %s703, 16
          %s705 = scalar_lea.vmem [#allocation8], %s704
          %706 = dma.done %s702, 256
        $region60: #{tpu_custom_call.1} parent=51 // pred_fallthru
          _
        // Predicated region
        $region61: #{tpu_custom_call.1} parent=51 // pred_check
          %p707 = pneg %p156
        $region62: #{tpu_custom_call.1} parent=51 // pred_check_branch
          %709 = sbr.rel (%p707) target = $region64
        $region63: #{tpu_custom_call.1} parent=51 // pred_region
          %s710 = sand.u32 %s35, 1
          %s711 = scalar_lea.sflag [#allocation9], %s710
          %s712 = sand.u32 %s141, 1
          %s713 = smul.addr %s712, 16
          %s714 = scalar_lea.vmem [#allocation10], %s713
          %715 = dma.done %s711, 256
        $region64: #{tpu_custom_call.1} parent=51 // pred_fallthru
          _
        // Predicated region
        $region65: #{tpu_custom_call.1} parent=51 // pred_check
          %p716 = pneg %p184
        $region66: #{tpu_custom_call.1} parent=51 // pred_check_branch
          %718 = sbr.rel (%p716) target = $region68
        $region67: #{tpu_custom_call.1} parent=51 // pred_region
          %s719 = sand.u32 %s35, 1
          %s720 = scalar_lea.sflag [#allocation12], %s719
          %s721 = sand.u32 %s169, 1
          %s722 = smul.addr %s721, 16
          %s723 = scalar_lea.vmem [#allocation11], %s722
          %724 = dma.done %s720, 256
        $region68: #{tpu_custom_call.1} parent=51 // pred_fallthru
          _
        // Predicated region
        $region69: #{tpu_custom_call.1} parent=51 // pred_check
          %p725 = pneg %p212
        $region70: #{tpu_custom_call.1} parent=51 // pred_check_branch
          %727 = sbr.rel (%p725) target = $region72
        $region71: #{tpu_custom_call.1} parent=51 // pred_region
          %s728 = sand.u32 %s35, 1
          %s729 = scalar_lea.sflag [#allocation12], %s728
          %s730 = sand.u32 %s197, 1
          %s731 = smul.addr %s730, 32
          %s732 = scalar_lea.vmem [#allocation13], %s731
          %733 = dma.done %s729, 512
        $region72: #{tpu_custom_call.1} parent=51 // pred_fallthru
          _
      $region52: #{tpu_custom_call.1} parent=5 // pred_fallthru
        _
    $region6: #{tpu_custom_call.1} parent=1 // loop_footer
      %s33 = sadd.s32 1, %s29
    $region7: #{tpu_custom_call.1} parent=1 // loop_footer_branch
      %28 = sbr.rel target = $region3
    $region8: #{tpu_custom_call.1} parent=1 // loop_exit
      _
    %734 = vsyncpa [#allocation5], 1
    %s735 = scalar_lea.sflag [#allocation5], 1
    %736 = vsyncpa %s735, 1
    %737 = vsyncpa [#allocation6], 1
    %s738 = scalar_lea.sflag [#allocation6], 1
    %739 = vsyncpa %s738, 1
    %740 = vsyncpa [#allocation9], 1
    %s741 = scalar_lea.sflag [#allocation9], 1
    %742 = vsyncpa %s741, 1
    %743 = vsyncpa [#allocation12], 1
    %s744 = scalar_lea.sflag [#allocation12], 1
    %745 = vsyncpa %s744, 1

</llo_original>
